<compile_context>
chip_gen: v7x
topology: tpu7x:2x2x1
jax: 0.10.0
libtpu: 0.0.40
codegen_flags: <defaults>
</compile_context>

<pallas_src>
import functools

import jax
import jax.numpy as jnp
from jax.experimental import pallas as pl
from jax.experimental.pallas import tpu as pltpu

N_DENSE = 2
LN_EPS = 1e-5
L2_EPS = 1e-12


def _head_kernel(x_ref, w_ref, b_ref, gamma_ref, beta_ref, out_ref):
    """Fused dense head + L2-normalize on one batch tile of CLS embeddings.

    x_ref:     (TB, H)            CLS-pooled activations (one batch tile)
    w_ref:     (N_DENSE, H, H)    Linear weights, pre-transposed to (in, out)
    b_ref:     (N_DENSE, H)       Linear biases
    gamma_ref: (N_DENSE, H)       LayerNorm weights
    beta_ref:  (N_DENSE, H)       LayerNorm biases
    out_ref:   (TB, H)            pooler_output tile (f32)
    """
    x = x_ref[...].astype(jnp.float32)  # (TB, H)

    for i in range(N_DENSE):  # statically unrolled (N_DENSE is small & fixed)
        w = w_ref[i]                              # (H_in, H_out) — pre-transposed
        b = b_ref[i].astype(jnp.float32)          # (H,)
        gamma = gamma_ref[i].astype(jnp.float32)
        beta = beta_ref[i].astype(jnp.float32)

        # Linear: y = x @ W_t + b  (MXU, f32 accumulation; bf16 weights feed natively)
        y = jnp.dot(x.astype(w.dtype), w, preferred_element_type=jnp.float32)
        y = y + b[None, :]

        # LayerNorm over last dim (biased variance, eps=1e-5, elementwise affine)
        mean = jnp.mean(y, axis=-1, keepdims=True)
        centered = y - mean
        var = jnp.mean(centered * centered, axis=-1, keepdims=True)
        y = centered * jax.lax.rsqrt(var + LN_EPS)
        y = y * gamma[None, :] + beta[None, :]

        # ReLU  (Dropout(p=0.0) -> identity in eval mode)
        x = jnp.maximum(y, 0.0)

    # F.normalize(p=2, dim=-1): x / max(||x||_2, eps)
    # == x * rsqrt(max(sum(x^2), eps^2))  — single EUP rsqrt, no divide.
    sumsq = jnp.sum(x * x, axis=-1, keepdims=True)
    inv_norm = jax.lax.rsqrt(jnp.maximum(sumsq, L2_EPS * L2_EPS))
    out_ref[...] = (x * inv_norm).astype(out_ref.dtype)


@functools.partial(jax.jit, static_argnames=("batch_tile",))
def sentence_embedding_head(last_hidden_state, w, b, gamma, beta, *, batch_tile=256):
    """Forward of SentenceEmbeddingHead.

    last_hidden_state: (B, S, H)
    w: (N_DENSE, H_out, H_in)  -- PyTorch nn.Linear layout
    b, gamma, beta: (N_DENSE, H)
    Returns (last_hidden_state, pooler_output) like the PyTorch module.
    """
    B, S, H = last_hidden_state.shape

    # CLS pooling done in the wrapper: only (B, H) ever enters the kernel / VMEM.
    cls = last_hidden_state[:, 0, :]

    # Pre-transpose Linear weights once to (N_DENSE, H_in, H_out) so the kernel's
    # matmuls are straight MXU pushes (no in-kernel XLU transpose).
    w_t = jnp.swapaxes(w, 1, 2)

    tb = min(batch_tile, B)
    grid = (pl.cdiv(B, tb),)

    pooled = pl.pallas_call(
        _head_kernel,
        out_shape=jax.ShapeDtypeStruct((B, H), jnp.float32),
        grid=grid,
        in_specs=[
            # Batch-tiled CLS embeddings: pipelined over the grid.
            pl.BlockSpec((tb, H), lambda i: (i, 0)),
            # Parameters: constant block index -> DMA'd once, resident across tiles.
            pl.BlockSpec((N_DENSE, H, H), lambda i: (0, 0, 0)),
            pl.BlockSpec((N_DENSE, H), lambda i: (0, 0)),
            pl.BlockSpec((N_DENSE, H), lambda i: (0, 0)),
            pl.BlockSpec((N_DENSE, H), lambda i: (0, 0)),
        ],
        out_specs=pl.BlockSpec((tb, H), lambda i: (i, 0)),
        compiler_params=pltpu.CompilerParams(
            # Batch tiles are independent -> shard across both TCs on v7x.
            dimension_semantics=("parallel",),
            # Headroom for resident weight blocks at larger H (safe on v5e/v6e/v7x).
            vmem_limit_bytes=64 * 1024 * 1024,
        ),
    )(cls, w_t, b, gamma, beta)

    # Module returns both the untouched last_hidden_state and the pooled embedding.
    return last_hidden_state, pooled


def _reference(last_hidden_state, w, b, gamma, beta):
    """Pure-JAX reference of the PyTorch forward, for a sanity check."""
    x = last_hidden_state[:, 0, :].astype(jnp.float32)
    for i in range(N_DENSE):
        y = x @ w[i].T + b[i]
        mean = jnp.mean(y, axis=-1, keepdims=True)
        var = jnp.mean((y - mean) ** 2, axis=-1, keepdims=True)
        y = (y - mean) / jnp.sqrt(var + LN_EPS) * gamma[i] + beta[i]
        x = jnp.maximum(y, 0.0)
    norm = jnp.linalg.norm(x, axis=-1, keepdims=True)
    return x / jnp.maximum(norm, L2_EPS)


if __name__ == "__main__":
    key = jax.random.PRNGKey(0)
    H = 32  # backbone_hidden_size (small test shape)

    k_x, k_w, k_b, k_x2 = jax.random.split(key, 4)

    # Deterministic synthetic parameters (PyTorch Linear layout: (out, in)).
    bound = 1.0 / jnp.sqrt(H)
    w = jax.random.uniform(k_w, (N_DENSE, H, H), minval=-bound, maxval=bound,
                           dtype=jnp.float32)
    b = jax.random.uniform(k_b, (N_DENSE, H), minval=-bound, maxval=bound,
                           dtype=jnp.float32)
    gamma = jnp.ones((N_DENSE, H), dtype=jnp.float32)  # LayerNorm default init
    beta = jnp.zeros((N_DENSE, H), dtype=jnp.float32)

    # Case 1: small module-consistent shapes (single batch tile).
    B, S = 2, 8
    last_hidden_state = jax.random.normal(k_x, (B, S, H), dtype=jnp.float32)
    lhs_out, pooler_out = sentence_embedding_head(last_hidden_state, w, b, gamma, beta)
    pooler_out = jax.block_until_ready(pooler_out)
    lhs_out = jax.block_until_ready(lhs_out)

    ref = _reference(last_hidden_state, w, b, gamma, beta)
    assert pooler_out.shape == (B, H)
    assert lhs_out.shape == (B, S, H)
    assert jnp.allclose(pooler_out, ref, rtol=1e-5, atol=1e-5), "mismatch vs reference"

    # Case 2: exercises the batch-tiled grid (multiple pipelined tiles).
    B2, S2 = 16, 8
    lhs2 = jax.random.normal(k_x2, (B2, S2, H), dtype=jnp.float32)
    _, pooled2 = sentence_embedding_head(lhs2, w, b, gamma, beta, batch_tile=8)
    pooled2 = jax.block_until_ready(pooled2)
    ref2 = _reference(lhs2, w, b, gamma, beta)
    assert pooled2.shape == (B2, H)
    assert jnp.allclose(pooled2, ref2, rtol=1e-5, atol=1e-5), "mismatch vs reference (tiled)"

    print("KERNEL_OK")
</pallas_src>

<mosaic_0001>
module attributes {stable_mosaic.version = 11 : i64} {
  func.func @_head_kernel(%arg0: i32, %arg1: memref<2x32xf32, #tpu.memory_space<vmem>>, %arg2: memref<2x32x32xf32, #tpu.memory_space<vmem>>, %arg3: memref<2x32xf32, #tpu.memory_space<vmem>>, %arg4: memref<2x32xf32, #tpu.memory_space<vmem>>, %arg5: memref<2x32xf32, #tpu.memory_space<vmem>>, %arg6: memref<2x32xf32, #tpu.memory_space<vmem>>) attributes {dimension_semantics = [#tpu.dimension_semantics<parallel>], iteration_bounds = array<i64: 1>, scalar_prefetch = 0 : i64, scratch_operands = 0 : i64, tpu.core_type = #tpu.core_type<tc>, window_params = [{transform_indices = @transform_0, window_bounds = array<i64: 2, 32>}, {pipeline_mode = #tpu.pipeline_mode<synchronous>, transform_indices = @transform_1, window_bounds = array<i64: 2, 32, 32>}, {pipeline_mode = #tpu.pipeline_mode<synchronous>, transform_indices = @transform_2, window_bounds = array<i64: 2, 32>}, {pipeline_mode = #tpu.pipeline_mode<synchronous>, transform_indices = @transform_3, window_bounds = array<i64: 2, 32>}, {pipeline_mode = #tpu.pipeline_mode<synchronous>, transform_indices = @transform_4, window_bounds = array<i64: 2, 32>}, {transform_indices = @transform_5, window_bounds = array<i64: 2, 32>}]} {
    %c0 = arith.constant 0 : index
    %c0_0 = arith.constant 0 : index
    %0 = vector.load %arg1[%c0, %c0_0] : memref<2x32xf32, #tpu.memory_space<vmem>>, vector<2x32xf32>
    %c0_1 = arith.constant 0 : index
    %c0_2 = arith.constant 0 : index
    %c0_3 = arith.constant 0 : index
    %1 = vector.load %arg2[%c0_1, %c0_2, %c0_3] : memref<2x32x32xf32, #tpu.memory_space<vmem>>, vector<1x32x32xf32>
    %2 = vector.shape_cast %1 : vector<1x32x32xf32> to vector<32x32xf32>
    %c0_4 = arith.constant 0 : index
    %c0_5 = arith.constant 0 : index
    %3 = vector.load %arg3[%c0_4, %c0_5] : memref<2x32xf32, #tpu.memory_space<vmem>>, vector<1x32xf32>
    %4 = vector.shape_cast %3 : vector<1x32xf32> to vector<32xf32>
    %c0_6 = arith.constant 0 : index
    %c0_7 = arith.constant 0 : index
    %5 = vector.load %arg4[%c0_6, %c0_7] : memref<2x32xf32, #tpu.memory_space<vmem>>, vector<1x32xf32>
    %6 = vector.shape_cast %5 : vector<1x32xf32> to vector<32xf32>
    %c0_8 = arith.constant 0 : index
    %c0_9 = arith.constant 0 : index
    %7 = vector.load %arg5[%c0_8, %c0_9] : memref<2x32xf32, #tpu.memory_space<vmem>>, vector<1x32xf32>
    %8 = vector.shape_cast %7 : vector<1x32xf32> to vector<32xf32>
    %cst = arith.constant dense<0.000000e+00> : vector<2x32xf32>
    %9 = tpu.matmul %0, %2, %cst {dimension_numbers = #tpu.dot_dimension_numbers<[1], [0], [0], [1], [0, 0, 1, 1], [], []>} : vector<2x32xf32>, vector<32x32xf32>, vector<2x32xf32> -> vector<2x32xf32>
    %10 = vector.shape_cast %4 : vector<32xf32> to vector<1x32xf32>
    %11 = vector.broadcast %10 : vector<1x32xf32> to vector<2x32xf32>
    %12 = arith.addf %9, %11 : vector<2x32xf32>
    %cst_10 = arith.constant dense<0.000000e+00> : vector<2xf32>
    %13 = vector.multi_reduction <add>, %12, %cst_10 [1] : vector<2x32xf32> to vector<2xf32>
    %14 = vector.shape_cast %13 : vector<2xf32> to vector<2x1xf32>
    %cst_11 = arith.constant 3.200000e+01 : f32
    %15 = vector.broadcast %cst_11 : f32 to vector<2x1xf32>
    %16 = arith.divf %14, %15 : vector<2x1xf32>
    %17 = vector.broadcast %16 : vector<2x1xf32> to vector<2x32xf32>
    %18 = arith.subf %12, %17 : vector<2x32xf32>
    %19 = arith.mulf %18, %18 : vector<2x32xf32>
    %cst_12 = arith.constant dense<0.000000e+00> : vector<2xf32>
    %20 = vector.multi_reduction <add>, %19, %cst_12 [1] : vector<2x32xf32> to vector<2xf32>
    %21 = vector.shape_cast %20 : vector<2xf32> to vector<2x1xf32>
    %cst_13 = arith.constant 3.200000e+01 : f32
    %22 = vector.broadcast %cst_13 : f32 to vector<2x1xf32>
    %23 = arith.divf %21, %22 : vector<2x1xf32>
    %cst_14 = arith.constant 9.99999974E-6 : f32
    %24 = vector.broadcast %cst_14 : f32 to vector<2x1xf32>
    %25 = arith.addf %23, %24 : vector<2x1xf32>
    %26 = math.rsqrt %25 : vector<2x1xf32>
    %27 = vector.broadcast %26 : vector<2x1xf32> to vector<2x32xf32>
    %28 = arith.mulf %18, %27 : vector<2x32xf32>
    %29 = vector.shape_cast %6 : vector<32xf32> to vector<1x32xf32>
    %30 = vector.broadcast %29 : vector<1x32xf32> to vector<2x32xf32>
    %31 = arith.mulf %28, %30 : vector<2x32xf32>
    %32 = vector.shape_cast %8 : vector<32xf32> to vector<1x32xf32>
    %33 = vector.broadcast %32 : vector<1x32xf32> to vector<2x32xf32>
    %34 = arith.addf %31, %33 : vector<2x32xf32>
    %cst_15 = arith.constant 0.000000e+00 : f32
    %35 = vector.broadcast %cst_15 : f32 to vector<2x32xf32>
    %36 = arith.maximumf %34, %35 : vector<2x32xf32>
    %c1 = arith.constant 1 : index
    %c0_16 = arith.constant 0 : index
    %c0_17 = arith.constant 0 : index
    %37 = vector.load %arg2[%c1, %c0_16, %c0_17] : memref<2x32x32xf32, #tpu.memory_space<vmem>>, vector<1x32x32xf32>
    %38 = vector.shape_cast %37 : vector<1x32x32xf32> to vector<32x32xf32>
    %c1_18 = arith.constant 1 : index
    %c0_19 = arith.constant 0 : index
    %39 = vector.load %arg3[%c1_18, %c0_19] : memref<2x32xf32, #tpu.memory_space<vmem>>, vector<1x32xf32>
    %40 = vector.shape_cast %39 : vector<1x32xf32> to vector<32xf32>
    %c1_20 = arith.constant 1 : index
    %c0_21 = arith.constant 0 : index
    %41 = vector.load %arg4[%c1_20, %c0_21] : memref<2x32xf32, #tpu.memory_space<vmem>>, vector<1x32xf32>
    %42 = vector.shape_cast %41 : vector<1x32xf32> to vector<32xf32>
    %c1_22 = arith.constant 1 : index
    %c0_23 = arith.constant 0 : index
    %43 = vector.load %arg5[%c1_22, %c0_23] : memref<2x32xf32, #tpu.memory_space<vmem>>, vector<1x32xf32>
    %44 = vector.shape_cast %43 : vector<1x32xf32> to vector<32xf32>
    %cst_24 = arith.constant dense<0.000000e+00> : vector<2x32xf32>
    %45 = tpu.matmul %36, %38, %cst_24 {dimension_numbers = #tpu.dot_dimension_numbers<[1], [0], [0], [1], [0, 0, 1, 1], [], []>} : vector<2x32xf32>, vector<32x32xf32>, vector<2x32xf32> -> vector<2x32xf32>
    %46 = vector.shape_cast %40 : vector<32xf32> to vector<1x32xf32>
    %47 = vector.broadcast %46 : vector<1x32xf32> to vector<2x32xf32>
    %48 = arith.addf %45, %47 : vector<2x32xf32>
    %cst_25 = arith.constant dense<0.000000e+00> : vector<2xf32>
    %49 = vector.multi_reduction <add>, %48, %cst_25 [1] : vector<2x32xf32> to vector<2xf32>
    %50 = vector.shape_cast %49 : vector<2xf32> to vector<2x1xf32>
    %cst_26 = arith.constant 3.200000e+01 : f32
    %51 = vector.broadcast %cst_26 : f32 to vector<2x1xf32>
    %52 = arith.divf %50, %51 : vector<2x1xf32>
    %53 = vector.broadcast %52 : vector<2x1xf32> to vector<2x32xf32>
    %54 = arith.subf %48, %53 : vector<2x32xf32>
    %55 = arith.mulf %54, %54 : vector<2x32xf32>
    %cst_27 = arith.constant dense<0.000000e+00> : vector<2xf32>
    %56 = vector.multi_reduction <add>, %55, %cst_27 [1] : vector<2x32xf32> to vector<2xf32>
    %57 = vector.shape_cast %56 : vector<2xf32> to vector<2x1xf32>
    %cst_28 = arith.constant 3.200000e+01 : f32
    %58 = vector.broadcast %cst_28 : f32 to vector<2x1xf32>
    %59 = arith.divf %57, %58 : vector<2x1xf32>
    %cst_29 = arith.constant 9.99999974E-6 : f32
    %60 = vector.broadcast %cst_29 : f32 to vector<2x1xf32>
    %61 = arith.addf %59, %60 : vector<2x1xf32>
    %62 = math.rsqrt %61 : vector<2x1xf32>
    %63 = vector.broadcast %62 : vector<2x1xf32> to vector<2x32xf32>
    %64 = arith.mulf %54, %63 : vector<2x32xf32>
    %65 = vector.shape_cast %42 : vector<32xf32> to vector<1x32xf32>
    %66 = vector.broadcast %65 : vector<1x32xf32> to vector<2x32xf32>
    %67 = arith.mulf %64, %66 : vector<2x32xf32>
    %68 = vector.shape_cast %44 : vector<32xf32> to vector<1x32xf32>
    %69 = vector.broadcast %68 : vector<1x32xf32> to vector<2x32xf32>
    %70 = arith.addf %67, %69 : vector<2x32xf32>
    %cst_30 = arith.constant 0.000000e+00 : f32
    %71 = vector.broadcast %cst_30 : f32 to vector<2x32xf32>
    %72 = arith.maximumf %70, %71 : vector<2x32xf32>
    %73 = arith.mulf %72, %72 : vector<2x32xf32>
    %cst_31 = arith.constant dense<0.000000e+00> : vector<2xf32>
    %74 = vector.multi_reduction <add>, %73, %cst_31 [1] : vector<2x32xf32> to vector<2xf32>
    %75 = vector.shape_cast %74 : vector<2xf32> to vector<2x1xf32>
    %cst_32 = arith.constant 1.000000e-24 : f32
    %76 = vector.broadcast %cst_32 : f32 to vector<2x1xf32>
    %77 = arith.maximumf %75, %76 : vector<2x1xf32>
    %78 = math.rsqrt %77 : vector<2x1xf32>
    %79 = vector.broadcast %78 : vector<2x1xf32> to vector<2x32xf32>
    %80 = arith.mulf %72, %79 : vector<2x32xf32>
    %c0_33 = arith.constant 0 : index
    %c0_34 = arith.constant 0 : index
    %81 = vector.load %arg6[%c0_33, %c0_34] : memref<2x32xf32, #tpu.memory_space<vmem>>, vector<2x32xf32>
    tpu.vector_store %arg6[%c0_33, %c0_34], %80 {strides = array<i32>} : memref<2x32xf32, #tpu.memory_space<vmem>>, vector<2x32xf32>,
    return
  }
  func.func @transform_0(%arg0: i32) -> (i32, i32) {
    %c0_i32 = arith.constant 0 : i32
    %c0_i32_0 = arith.constant 0 : i32
    return %arg0, %c0_i32 : i32, i32
  }
  func.func @transform_1(%arg0: i32) -> (i32, i32, i32) {
    %c0_i32 = arith.constant 0 : i32
    %c0_i32_0 = arith.constant 0 : i32
    %c0_i32_1 = arith.constant 0 : i32
    %c0_i32_2 = arith.constant 0 : i32
    return %c0_i32, %c0_i32_0, %c0_i32_1 : i32, i32, i32
  }
  func.func @transform_2(%arg0: i32) -> (i32, i32) {
    %c0_i32 = arith.constant 0 : i32
    %c0_i32_0 = arith.constant 0 : i32
    %c0_i32_1 = arith.constant 0 : i32
    return %c0_i32, %c0_i32_0 : i32, i32
  }
  func.func @transform_3(%arg0: i32) -> (i32, i32) {
    %c0_i32 = arith.constant 0 : i32
    %c0_i32_0 = arith.constant 0 : i32
    %c0_i32_1 = arith.constant 0 : i32
    return %c0_i32, %c0_i32_0 : i32, i32
  }
  func.func @transform_4(%arg0: i32) -> (i32, i32) {
    %c0_i32 = arith.constant 0 : i32
    %c0_i32_0 = arith.constant 0 : i32
    %c0_i32_1 = arith.constant 0 : i32
    return %c0_i32, %c0_i32_0 : i32, i32
  }
  func.func @transform_5(%arg0: i32) -> (i32, i32) {
    %c0_i32 = arith.constant 0 : i32
    %c0_i32_0 = arith.constant 0 : i32
    return %arg0, %c0_i32 : i32, i32
  }
}

</mosaic_0001>

<llo_original>
// kernel: sentence_embedding_head.1
$region0: #{sentence_embedding_head.1}
  #allocation0 [shape = 'u32[]', space=smem, size = 0x4, offset = 0x4, fixed_abs, tag = 'smem constant byte address 0x4 - core index']
  #allocation1 [shape = 'u32[144,128]{1,0:T(1,128)}', space=vmem, size = 0x12000, scoped, tag = 'internal scratch']
  %s0 = inlined_call_operand.hbm [shape: f32[2,32], index: 0, kind: input, shape index: {}]
  %s1 = inlined_call_operand.hbm [shape: f32[2,32,32], index: 1, kind: input, shape index: {}]
  %s2 = inlined_call_operand.hbm [shape: f32[2,32], index: 2, kind: input, shape index: {}]
  %s3 = inlined_call_operand.hbm [shape: f32[2,32], index: 3, kind: input, shape index: {}]
  %s4 = inlined_call_operand.hbm [shape: f32[2,32], index: 4, kind: input, shape index: {}]
  %s5 = inlined_call_operand.hbm [shape: f32[2,32], index: 5, kind: output, shape index: {}]
  %s6 = sld [smem:[#allocation0]]
  $region50: #{sentence_embedding_head.1} parent=0
    _
  %s8 = ssub.s32 1, %s6
  %s9 = scalar_select 0, %s8, %s6
  $region1: #{sentence_embedding_head.1} parent=0
    #allocation2 [shape = 'u8[1024]{0}', space=vmem, size = 0x400, scoped, tag = 'input window, operand 0, single buffered']
    #allocation3 [shape = 's32[1]{0}', space=sflag, size = 0x4, scoped, tag = 'scoped memory for sentence_embedding_head.1']
    #allocation4 [shape = 's32[1]{0}', space=sflag, size = 0x4, scoped, tag = 'scoped memory for sentence_embedding_head.1']
    #allocation5 [shape = 'u8[32768]{0}', space=vmem, size = 0x8000, scoped, tag = 'input window, operand 1, single buffered']
    #allocation6 [shape = 's32[1]{0}', space=sflag, size = 0x4, scoped, tag = 'scoped memory for sentence_embedding_head.1']
    #allocation7 [shape = 'u8[1024]{0}', space=vmem, size = 0x400, scoped, tag = 'input window, operand 2, single buffered']
    #allocation8 [shape = 'u8[1024]{0}', space=vmem, size = 0x400, scoped, tag = 'input window, operand 3, single buffered']
    #allocation9 [shape = 's32[1]{0}', space=sflag, size = 0x4, scoped, tag = 'scoped memory for sentence_embedding_head.1']
    #allocation10 [shape = 'u8[1024]{0}', space=vmem, size = 0x400, scoped, tag = 'input window, operand 4, single buffered']
    #allocation11 [shape = 'u8[1024]{0}', space=vmem, size = 0x400, scoped, tag = 'output window, operand 0, single buffered']
    %10 = vsyncpa [#allocation3], 0
    %11 = vsyncpa [#allocation6], 0
    %12 = vsyncpa [#allocation9], 0
    %13 = vsyncpa [#allocation4], 0
    // Predicated region
    $region2: #{sentence_embedding_head.1} parent=1 // pred_check
      _
    $region3: #{sentence_embedding_head.1} parent=1 // pred_check_branch
      %15 = sbr.rel (0) target = $region5
    $region4: #{sentence_embedding_head.1} parent=1 // pred_region
      %s17 = ssub.s32 32, 32
      %18 = vsyncadd [#allocation3], %s17
      %s20 = sshll.u32 [#allocation2], 4
      %s21 = int_to_ptr.vmem [resolvable:$true] %s20
      %23 = dma.hbm_to_vmem [thread:$0]  %s0, 32, %s21, [#allocation3]
    $region5: #{sentence_embedding_head.1} parent=1 // pred_fallthru
      _
    // Predicated region
    $region6: #{sentence_embedding_head.1} parent=1 // pred_check
      _
    $region7: #{sentence_embedding_head.1} parent=1 // pred_check_branch
      %25 = sbr.rel (0) target = $region9
    $region8: #{sentence_embedding_head.1} parent=1 // pred_region
      %s27 = ssub.s32 1024, 1024
      %28 = vsyncadd [#allocation6], %s27
      %s29 = sshll.u32 [#allocation5], 4
      %s30 = int_to_ptr.vmem [resolvable:$true] %s29
      %35 = dma.hbm_to_vmem [thread:$0]  %s1, 1024, %s30, [#allocation6], 128, 128, 8
    $region9: #{sentence_embedding_head.1} parent=1 // pred_fallthru
      _
    // Predicated region
    $region10: #{sentence_embedding_head.1} parent=1 // pred_check
      _
    $region11: #{sentence_embedding_head.1} parent=1 // pred_check_branch
      %37 = sbr.rel (0) target = $region13
    $region12: #{sentence_embedding_head.1} parent=1 // pred_region
      %s39 = ssub.s32 32, 32
      %40 = vsyncadd [#allocation6], %s39
      %s42 = sshll.u32 [#allocation7], 4
      %s43 = int_to_ptr.vmem [resolvable:$true] %s42
      %45 = dma.hbm_to_vmem [thread:$0]  %s2, 32, %s43, [#allocation6]
    $region13: #{sentence_embedding_head.1} parent=1 // pred_fallthru
      _
    // Predicated region
    $region14: #{sentence_embedding_head.1} parent=1 // pred_check
      _
    $region15: #{sentence_embedding_head.1} parent=1 // pred_check_branch
      %47 = sbr.rel (0) target = $region17
    $region16: #{sentence_embedding_head.1} parent=1 // pred_region
      %s49 = ssub.s32 32, 32
      %50 = vsyncadd [#allocation9], %s49
      %s52 = sshll.u32 [#allocation8], 4
      %s53 = int_to_ptr.vmem [resolvable:$true] %s52
      %55 = dma.hbm_to_vmem [thread:$0]  %s3, 32, %s53, [#allocation9]
    $region17: #{sentence_embedding_head.1} parent=1 // pred_fallthru
      _
    // Predicated region
    $region18: #{sentence_embedding_head.1} parent=1 // pred_check
      _
    $region19: #{sentence_embedding_head.1} parent=1 // pred_check_branch
      %57 = sbr.rel (0) target = $region21
    $region20: #{sentence_embedding_head.1} parent=1 // pred_region
      %s59 = ssub.s32 32, 32
      %60 = vsyncadd [#allocation9], %s59
      %s62 = sshll.u32 [#allocation10], 4
      %s63 = int_to_ptr.vmem [resolvable:$true] %s62
      %65 = dma.hbm_to_vmem [thread:$0]  %s4, 32, %s63, [#allocation9]
    $region21: #{sentence_embedding_head.1} parent=1 // pred_fallthru
      _
    // Predicated region
    $region22: #{sentence_embedding_head.1} parent=1 // pred_check
      _
    $region23: #{sentence_embedding_head.1} parent=1 // pred_check_branch
      %67 = sbr.rel (0) target = $region25
    $region24: #{sentence_embedding_head.1} parent=1 // pred_region
      %68 = dma.done [#allocation3], 32
    $region25: #{sentence_embedding_head.1} parent=1 // pred_fallthru
      _
    // Predicated region
    $region26: #{sentence_embedding_head.1} parent=1 // pred_check
      _
    $region27: #{sentence_embedding_head.1} parent=1 // pred_check_branch
      %70 = sbr.rel (0) target = $region29
    $region28: #{sentence_embedding_head.1} parent=1 // pred_region
      %71 = dma.done [#allocation6], 1024
    $region29: #{sentence_embedding_head.1} parent=1 // pred_fallthru
      _
    // Predicated region
    $region30: #{sentence_embedding_head.1} parent=1 // pred_check
      _
    $region31: #{sentence_embedding_head.1} parent=1 // pred_check_branch
      %73 = sbr.rel (0) target = $region33
    $region32: #{sentence_embedding_head.1} parent=1 // pred_region
      %74 = dma.done [#allocation6], 32
    $region33: #{sentence_embedding_head.1} parent=1 // pred_fallthru
      _
    // Predicated region
    $region34: #{sentence_embedding_head.1} parent=1 // pred_check
      _
    $region35: #{sentence_embedding_head.1} parent=1 // pred_check_branch
      %76 = sbr.rel (0) target = $region37
    $region36: #{sentence_embedding_head.1} parent=1 // pred_region
      %77 = dma.done [#allocation9], 32
    $region37: #{sentence_embedding_head.1} parent=1 // pred_fallthru
      _
    // Predicated region
    $region38: #{sentence_embedding_head.1} parent=1 // pred_check
      _
    $region39: #{sentence_embedding_head.1} parent=1 // pred_check_branch
      %79 = sbr.rel (0) target = $region41
    $region40: #{sentence_embedding_head.1} parent=1 // pred_region
      %80 = dma.done [#allocation9], 32
    $region41: #{sentence_embedding_head.1} parent=1 // pred_fallthru
      _
    %v81 = vld [vmem:[#allocation2] sm:$0x3]
    %v82 = vld [vmem:[#allocation5] sm:$0xff]
    %v83 = vld [vmem:[#allocation5 + $0x8] sm:$0xff]
    %v84 = vld [vmem:[#allocation5 + $0x10] sm:$0xff]
    %v85 = vld [vmem:[#allocation5 + $0x18] sm:$0xff]
    %v86 = vld [vmem:[#allocation7] sm:$0x1]
    %v87 = vld [vmem:[#allocation8] sm:$0x1]
    %v88 = vld [vmem:[#allocation10] sm:$0x1]
    %v89 = vlaneseq
    %v90 = vshrl.u32 %v89, 7
    %v91 = vsub.s32 0, %v90
    %v92 = vrot.slane %v86, %v91
    %vm93 = vcmask 261120
    %v95 = vsel %vm93, %v81, 0
    %97 = vmatprep.subr.mxu0 0.0
    %98 = vmatpush1.msra.mxu0 %v82
    %99 = vmatprep.subr.mxu0 0.0
    %100 = vmatpush1.msra.mxu0 %v83
    %101 = vmatprep.subr.mxu0 0.0
    %102 = vmatpush1.msra.mxu0 %v84
    %103 = vmatprep.subr.mxu0 0.0
    %104 = vmatpush1.msra.mxu0 %v85
    %105 = vmatprep.subr.mxu0 0.0
    %106 = vmatpush1.msra.mxu0 0.0
    %107 = vmatprep.subr.mxu0 0.0
    %108 = vmatpush1.msra.mxu0 0.0
    %109 = vmatprep.subr.mxu0 0.0
    %110 = vmatpush1.msra.mxu0 0.0
    %111 = vmatprep.subr.mxu0 0.0
    %112 = vmatpush1.msra.mxu0 0.0
    %113 = vmatprep.subr.mxu0 0.0
    %114 = vmatpush1.msra.mxu0 0.0
    %115 = vmatprep.subr.mxu0 0.0
    %116 = vmatpush1.msra.mxu0 0.0
    %117 = vmatprep.subr.mxu0 0.0
    %118 = vmatpush1.msra.mxu0 0.0
    %119 = vmatprep.subr.mxu0 0.0
    %120 = vmatpush1.msra.mxu0 0.0
    %121 = vmatprep.subr.mxu0 0.0
    %122 = vmatpush1.msra.mxu0 0.0
    %123 = vmatprep.subr.mxu0 0.0
    %124 = vmatpush1.msra.mxu0 0.0
    %125 = vmatprep.subr.mxu0 0.0
    %126 = vmatpush1.msra.mxu0 0.0
    %127 = vmatprep.subr.mxu0 0.0
    %128 = vmatpush1.msra.mxu0 0.0
    %129 = vmatprep.subr.mxu0 0.0
    %130 = vmatpush1.msra.mxu0 0.0
    %131 = vmatprep.subr.mxu0 0.0
    %132 = vmatpush1.msra.mxu0 0.0
    %133 = vmatprep.subr.mxu0 0.0
    %134 = vmatpush1.msra.mxu0 0.0
    %135 = vmatprep.subr.mxu0 0.0
    %136 = vmatpush1.msra.mxu0 0.0
    %137 = vmatprep.subr.mxu0 0.0
    %138 = vmatpush1.msra.mxu0 0.0
    %139 = vmatprep.subr.mxu0 0.0
    %140 = vmatpush1.msra.mxu0 0.0
    %141 = vmatprep.subr.mxu0 0.0
    %142 = vmatpush1.msra.mxu0 0.0
    %143 = vmatprep.subr.mxu0 0.0
    %144 = vmatpush1.msra.mxu0 0.0
    %145 = vmatprep.subr.mxu0 0.0
    %146 = vmatpush1.msra.mxu0 0.0
    %147 = vmatprep.subr.mxu0 0.0
    %148 = vmatpush1.msra.mxu0 0.0
    %149 = vmatprep.subr.mxu0 0.0
    %150 = vmatpush1.msra.mxu0 0.0
    %151 = vmatprep.subr.mxu0 0.0
    %152 = vmatpush1.msra.mxu0 0.0
    %153 = vmatprep.subr.mxu0 0.0
    %154 = vmatpush1.msra.mxu0 0.0
    %155 = vmatprep.subr.mxu0 0.0
    %156 = vmatpush1.msra.mxu0 0.0
    %157 = vmatprep.subr.mxu0 0.0
    %158 = vmatpush1.msra.mxu0 0.0
    %159 = vmatprep.subr.mxu0 0.0
    %160 = vmatpush1.msra.mxu0 0.0
    %161 = vmatprep.mubr.f32.mxu0 0.0
    %162 = vmatmul.mubr.f32.gmra.mrb[0].mxu0 %v95
    %v163 = vpop.f32.mrb[0].mxu0
    %v164 = vadd.f32 %v92, %v163
    %v165 = vpop.f32.mrb[0].mxu0
    %166 = vdwg.mxu0
    %vm167 = vcmask 254976
    %v168 = vsel %vm167, %v164, 0.0
    %169 = vadd.xlane.f32.xlu0 %v168
    %v170 = vpop.xlane.xlu0 %169
    %v171 = vrcp.pop 32.0
    %v172 = vmul.f32 %v170, %v171
    %v173 = vsub.f32 %v164, %v172
    %v174 = vmul.f32 %v173, %v173
    %v175 = vsel %vm167, %v174, 0.0
    %176 = vadd.xlane.f32.xlu0 %v175
    %v177 = vpop.xlane.xlu0 %176
    %v178 = vmul.f32 %v177, %v171
    %v179 = vadd.f32 %v178, 1e-05
    %v180 = vrsqrt.pop %v179
    %v181 = vmul.f32 %v173, %v180
    %v182 = vlaneseq
    %v183 = vshrl.u32 %v182, 7
    %v184 = vsub.s32 0, %v183
    %v185 = vrot.slane %v87, %v184
    %v186 = vmul.f32 %v181, %v185
    %v187 = vlaneseq
    %v188 = vshrl.u32 %v187, 7
    %v189 = vsub.s32 0, %v188
    %v190 = vrot.slane %v88, %v189
    %v191 = vadd.f32 %v186, %v190
    %v192 = vmax.f32 %v191, 0.0
    %s193 = scalar_lea.vmem [#allocation5], 32
    %v194 = vld [vmem:[%s193] sm:$0xff]
    %v195 = vld [vmem:[%s193 + $0x8] sm:$0xff]
    %v196 = vld [vmem:[%s193 + $0x10] sm:$0xff]
    %v197 = vld [vmem:[%s193 + $0x18] sm:$0xff]
    %v198 = vld [vmem:[#allocation7 + $0x1] sm:$0x1]
    %v199 = vld [vmem:[#allocation8 + $0x1] sm:$0x1]
    %v200 = vld [vmem:[#allocation10 + $0x1] sm:$0x1]
    %v201 = vlaneseq
    %v202 = vshrl.u32 %v201, 7
    %v203 = vsub.s32 0, %v202
    %v204 = vrot.slane %v198, %v203
    %v206 = vsel %vm93, %v192, 0
    %208 = vmatprep.subr.mxu0 0.0
    %209 = vmatpush1.msra.mxu0 %v194
    %210 = vmatprep.subr.mxu0 0.0
    %211 = vmatpush1.msra.mxu0 %v195
    %212 = vmatprep.subr.mxu0 0.0
    %213 = vmatpush1.msra.mxu0 %v196
    %214 = vmatprep.subr.mxu0 0.0
    %215 = vmatpush1.msra.mxu0 %v197
    %216 = vmatprep.subr.mxu0 0.0
    %217 = vmatpush1.msra.mxu0 0.0
    %218 = vmatprep.subr.mxu0 0.0
    %219 = vmatpush1.msra.mxu0 0.0
    %220 = vmatprep.subr.mxu0 0.0
    %221 = vmatpush1.msra.mxu0 0.0
    %222 = vmatprep.subr.mxu0 0.0
    %223 = vmatpush1.msra.mxu0 0.0
    %224 = vmatprep.subr.mxu0 0.0
    %225 = vmatpush1.msra.mxu0 0.0
    %226 = vmatprep.subr.mxu0 0.0
    %227 = vmatpush1.msra.mxu0 0.0
    %228 = vmatprep.subr.mxu0 0.0
    %229 = vmatpush1.msra.mxu0 0.0
    %230 = vmatprep.subr.mxu0 0.0
    %231 = vmatpush1.msra.mxu0 0.0
    %232 = vmatprep.subr.mxu0 0.0
    %233 = vmatpush1.msra.mxu0 0.0
    %234 = vmatprep.subr.mxu0 0.0
    %235 = vmatpush1.msra.mxu0 0.0
    %236 = vmatprep.subr.mxu0 0.0
    %237 = vmatpush1.msra.mxu0 0.0
    %238 = vmatprep.subr.mxu0 0.0
    %239 = vmatpush1.msra.mxu0 0.0
    %240 = vmatprep.subr.mxu0 0.0
    %241 = vmatpush1.msra.mxu0 0.0
    %242 = vmatprep.subr.mxu0 0.0
    %243 = vmatpush1.msra.mxu0 0.0
    %244 = vmatprep.subr.mxu0 0.0
    %245 = vmatpush1.msra.mxu0 0.0
    %246 = vmatprep.subr.mxu0 0.0
    %247 = vmatpush1.msra.mxu0 0.0
    %248 = vmatprep.subr.mxu0 0.0
    %249 = vmatpush1.msra.mxu0 0.0
    %250 = vmatprep.subr.mxu0 0.0
    %251 = vmatpush1.msra.mxu0 0.0
    %252 = vmatprep.subr.mxu0 0.0
    %253 = vmatpush1.msra.mxu0 0.0
    %254 = vmatprep.subr.mxu0 0.0
    %255 = vmatpush1.msra.mxu0 0.0
    %256 = vmatprep.subr.mxu0 0.0
    %257 = vmatpush1.msra.mxu0 0.0
    %258 = vmatprep.subr.mxu0 0.0
    %259 = vmatpush1.msra.mxu0 0.0
    %260 = vmatprep.subr.mxu0 0.0
    %261 = vmatpush1.msra.mxu0 0.0
    %262 = vmatprep.subr.mxu0 0.0
    %263 = vmatpush1.msra.mxu0 0.0
    %264 = vmatprep.subr.mxu0 0.0
    %265 = vmatpush1.msra.mxu0 0.0
    %266 = vmatprep.subr.mxu0 0.0
    %267 = vmatpush1.msra.mxu0 0.0
    %268 = vmatprep.subr.mxu0 0.0
    %269 = vmatpush1.msra.mxu0 0.0
    %270 = vmatprep.subr.mxu0 0.0
    %271 = vmatpush1.msra.mxu0 0.0
    %272 = vmatprep.mubr.f32.mxu0 0.0
    %273 = vmatmul.mubr.f32.gmra.mrb[0].mxu0 %v206
    %v274 = vpop.f32.mrb[0].mxu0
    %v275 = vadd.f32 %v204, %v274
    %v276 = vpop.f32.mrb[0].mxu0
    %277 = vdwg.mxu0
    %v278 = vsel %vm167, %v275, 0.0
    %279 = vadd.xlane.f32.xlu0 %v278
    %v280 = vpop.xlane.xlu0 %279
    %v281 = vmul.f32 %v280, %v171
    %v282 = vsub.f32 %v275, %v281
    %v283 = vmul.f32 %v282, %v282
    %v284 = vsel %vm167, %v283, 0.0
    %285 = vadd.xlane.f32.xlu0 %v284
    %v286 = vpop.xlane.xlu0 %285
    %v287 = vmul.f32 %v286, %v171
    %v288 = vadd.f32 %v287, 1e-05
    %v289 = vrsqrt.pop %v288
    %v290 = vmul.f32 %v282, %v289
    %v291 = vlaneseq
    %v292 = vshrl.u32 %v291, 7
    %v293 = vsub.s32 0, %v292
    %v294 = vrot.slane %v199, %v293
    %v295 = vmul.f32 %v290, %v294
    %v296 = vlaneseq
    %v297 = vshrl.u32 %v296, 7
    %v298 = vsub.s32 0, %v297
    %v299 = vrot.slane %v200, %v298
    %v300 = vadd.f32 %v295, %v299
    %v301 = vmax.f32 %v300, 0.0
    %v302 = vmul.f32 %v301, %v301
    %v303 = vsel %vm167, %v302, 0.0
    %304 = vadd.xlane.f32.xlu0 %v303
    %v305 = vpop.xlane.xlu0 %304
    %v306 = vmax.f32 %v305, 1e-24
    %v307 = vrsqrt.pop %v306
    %v308 = vmul.f32 %v301, %v307
    %309 = vst.msk [vmem:[#allocation11] sm:$0x3] %vm167, %v308
    // Predicated region
    $region42: #{sentence_embedding_head.1} parent=1 // pred_check
      _
    $region43: #{sentence_embedding_head.1} parent=1 // pred_check_branch
      %311 = sbr.rel (0) target = $region45
    $region44: #{sentence_embedding_head.1} parent=1 // pred_region
      %s313 = ssub.s32 32, 32
      %314 = vsyncadd [#allocation4], %s313
      %s316 = sshll.u32 [#allocation11], 4
      %s317 = int_to_ptr.vmem [resolvable:$true] %s316
      %319 = dma.vmem_to_hbm [thread:$0]  %s317, 32, %s5, [#allocation4]
    $region45: #{sentence_embedding_head.1} parent=1 // pred_fallthru
      _
    // Predicated region
    $region46: #{sentence_embedding_head.1} parent=1 // pred_check
      _
    $region47: #{sentence_embedding_head.1} parent=1 // pred_check_branch
      %321 = sbr.rel (0) target = $region49
    $region48: #{sentence_embedding_head.1} parent=1 // pred_region
      %322 = dma.done [#allocation4], 32
    $region49: #{sentence_embedding_head.1} parent=1 // pred_fallthru
      _
    %323 = vsyncpa [#allocation3], 1
    %324 = vsyncpa [#allocation6], 1
    %325 = vsyncpa [#allocation9], 1
    %326 = vsyncpa [#allocation4], 1

</llo_original>
